<compile_context>
chip_gen: v7x
topology: tpu7x:2x2x1
jax: 0.10.0
libtpu: 0.0.40
codegen_flags: <defaults>
</compile_context>

<pallas_src>
import functools
import math

import jax
import jax.numpy as jnp
from jax import lax
from jax.experimental import pallas as pl
from jax.experimental.pallas import tpu as pltpu


def _cdiv(a: int, b: int) -> int:
    return -(-a // b)


def _round_up(v: int, m: int) -> int:
    return ((v + m - 1) // m) * m


def _segmented_lane_allreduce(x, group: int, op):
    """All-reduce `op` within contiguous, aligned groups of `group` lanes.

    x: (rows, P) with P % group == 0 and `group` a power of two.  Returns the
    same shape where every lane holds the reduction of its group.  Implemented
    as an in-group XOR butterfly built from lane rotations (slice+concat), so
    the data stays lane-dense and only ops with both Mosaic and interpret-mode
    support are used.
    """
    p = x.shape[-1]
    lane = lax.broadcasted_iota(jnp.int32, (1, p), 1)
    s = 1
    while s < group:
        left = jnp.concatenate([x[:, s:], x[:, :s]], axis=-1)            # lane i -> i + s
        right = jnp.concatenate([x[:, p - s:], x[:, :p - s]], axis=-1)   # lane i -> i - s
        partner = jnp.where((lane & s) == 0, left, right)                # lane i -> i ^ s
        x = op(x, partner)
        s *= 2
    return x


def _plu_exp(z, *, k: int, xmin: float):
    """Piecewise-linear interpolant of exp(z) on k uniform segments of [xmin, 0].

    Assumes z <= 0 exactly (z = x - rowmax); values below xmin are clamped.
    Strength-reduced: one exp per element, no division.  No upper clamp is
    needed: z <= 0 implies t <= k, and the boundary seg == k still evaluates to
    exp(~0) * 1.
    """
    h = (-xmin) / k
    inv_h = 1.0 / h
    c = math.exp(h) - 1.0          # y_{i+1}/y_i - 1, so interp = y_i * (1 + frac*c)
    t = jnp.maximum((z - xmin) * inv_h, 0.0)     # in [0, k]; also clamps z < xmin
    seg = jnp.floor(t)
    frac = t - seg
    return jnp.exp(xmin + seg * h) * (1.0 + frac * c)


def _plumax_kernel(x_ref, o_ref, *, k: int, xmin: float, group: int):
    x = x_ref[...].astype(jnp.float32)           # (tm, W); lane-dense when folded
    if group == x.shape[-1]:
        # softmax axis spans the whole lane dimension of the block
        m = jnp.max(x, axis=-1, keepdims=True)
        e = _plu_exp(x - m, k=k, xmin=xmin)
        denom = jnp.sum(e, axis=-1, keepdims=True)
    else:
        # W // group original rows are packed along the lane axis; reductions
        # are per contiguous `group`-lane segment.
        m = _segmented_lane_allreduce(x, group, jnp.maximum)
        e = _plu_exp(x - m, k=k, xmin=xmin)
        denom = _segmented_lane_allreduce(e, group, jnp.add)
    # Exact normalization (approx reciprocal broke the 1e-3 sum-to-one check).
    o_ref[...] = (e * (1.0 / denom)).astype(o_ref.dtype)


def plu_max(x: jax.Array, k: int = 10000, xmin: float = -20.0,
            out_dtype=jnp.float32) -> jax.Array:
    """PLU-approximated softmax over the last axis.  Returns float32 by default."""
    orig_shape = x.shape
    n = int(orig_shape[-1])
    rows = 1
    for d in orig_shape[:-1]:
        rows *= int(d)
    x2 = x.reshape(rows, n)                      # native dtype; no extra HBM pass
    in_bytes = jnp.dtype(x2.dtype).itemsize

    # ---- lane-density folding for small softmax widths -----------------------
    # A softmax width < 128 would leave most lanes of every vreg idle and force
    # masked stores; fold G = 128 // n consecutive rows into the lane axis
    # (a free row-major reshape) and use segmented lane reductions instead.
    if n < 128 and 128 % n == 0 and rows % (128 // n) == 0:
        g = 128 // n
    else:
        g = 1   # TODO(synk): pad/repack path when n < 128 but rows % (128//n) != 0
    w = g * n
    r = rows // g
    xw = x2.reshape(r, w)

    # ---- generation-aware VMEM budget -----------------------------------------
    try:
        vmem_cap = int(pltpu.get_tpu_info().vmem_capacity_bytes)
    except Exception:                    # no TPU visible at trace time
        vmem_cap = 64 * 1024 * 1024      # assume the smallest (v7x)
    big_vmem = vmem_cap >= 96 * 1024 * 1024                     # v5e/v6e vs v7x
    vmem_limit = min((vmem_cap * 3) // 4, 96 * 1024 * 1024)     # 96 MiB / 48 MiB
    budget = vmem_limit - 8 * 1024 * 1024                       # headroom

    # per-row footprint: double-buffered input + output blocks plus ~6 live f32
    # temporaries (x cast, m, e, denom, butterfly partners)
    per_row = 2 * w * in_bytes + 2 * w * 4 + 6 * w * 4
    if 8 * per_row > budget:
        # TODO(synk): N-blocked (online-softmax) fallback for very long rows.
        raise ValueError(
            f"plu_max: softmax width {n} too large for a single VMEM tile "
            f"({8 * per_row} bytes needed, {budget} available).")

    # ---- row-tile sizing -------------------------------------------------------
    # Target 2-4 MiB blocks (f32 working width) to sit on the ~85% HBM-roofline
    # plateau; larger blocks on 128 MiB-VMEM parts.
    blk_target = (4 if big_vmem else 2) * 1024 * 1024
    tm = min(budget // per_row, blk_target // (w * 4))
    tm = max(8, tm)
    if r >= 4 * 32:
        # keep >= 4 grid steps (>= 2 per TensorCore on v7x) for pipelining
        tm = min(tm, _cdiv(r, 4))
    if tm >= 32:
        tm = (tm // 32) * 32             # packing-friendly for fp8..f32 sublanes
    else:
        tm = max(8, (tm // 8) * 8)
    tm = min(tm, _round_up(r, 8))        # never (much) larger than the array

    grid = (_cdiv(r, tm),)
    kernel = functools.partial(_plumax_kernel, k=k, xmin=xmin, group=n)

    out = pl.pallas_call(
        kernel,
        out_shape=jax.ShapeDtypeStruct((r, w), out_dtype),
        grid=grid,   # trailing partial block only reads padding rows, which are
                     # per-row independent and discarded on writeback
        in_specs=[pl.BlockSpec((tm, w), lambda i: (i, 0))],
        out_specs=pl.BlockSpec((tm, w), lambda i: (i, 0)),
        compiler_params=pltpu.CompilerParams(
            dimension_semantics=("parallel",),
            vmem_limit_bytes=vmem_limit,
        ),
    )(xw)

    return out.reshape(orig_shape)


if __name__ == "__main__":
    key = jax.random.PRNGKey(0)
    # small attention-score-like tensor: [batch=2, heads=4, seq=16, seq=16]
    x = jax.random.normal(key, (2, 4, 16, 16), dtype=jnp.float32) * 3.0

    y = jax.block_until_ready(plu_max(x, k=10000))

    # sanity: shape/dtype preserved/cast, rows sum to ~1
    assert y.shape == x.shape
    assert y.dtype == jnp.float32
    row_sums = jnp.sum(y, axis=-1)
    assert bool(jnp.all(jnp.abs(row_sums - 1.0) < 1e-3)), \
        float(jnp.max(jnp.abs(row_sums - 1.0)))

    # cross-check against exact softmax (PLU with k=10000 is a tight approximation)
    ref = jax.nn.softmax(x, axis=-1)
    assert bool(jnp.max(jnp.abs(y - ref)) < 1e-3), float(jnp.max(jnp.abs(y - ref)))

    # also exercise the non-folded (wide row) path
    x2 = jax.random.normal(jax.random.PRNGKey(1), (8, 256), dtype=jnp.float32) * 3.0
    y2 = jax.block_until_ready(plu_max(x2))
    ref2 = jax.nn.softmax(x2, axis=-1)
    assert bool(jnp.max(jnp.abs(y2 - ref2)) < 1e-3), float(jnp.max(jnp.abs(y2 - ref2)))
    assert bool(jnp.all(jnp.abs(jnp.sum(y2, axis=-1) - 1.0) < 1e-3))

    print("KERNEL_OK")
</pallas_src>

<mosaic_0001>
module attributes {stable_mosaic.version = 11 : i64} {
  func.func @_plumax_kernel(%arg0: i32, %arg1: memref<16x128xf32, #tpu.memory_space<vmem>>, %arg2: memref<16x128xf32, #tpu.memory_space<vmem>>) attributes {dimension_semantics = [#tpu.dimension_semantics<parallel>], iteration_bounds = array<i64: 1>, scalar_prefetch = 0 : i64, scratch_operands = 0 : i64, tpu.core_type = #tpu.core_type<tc>, window_params = [{transform_indices = @transform_0, window_bounds = array<i64: 16, 128>}, {transform_indices = @transform_1, window_bounds = array<i64: 16, 128>}]} {
    %c0 = arith.constant 0 : index
    %c0_0 = arith.constant 0 : index
    %0 = vector.load %arg1[%c0, %c0_0] : memref<16x128xf32, #tpu.memory_space<vmem>>, vector<16x128xf32>
    %1 = tpu.iota {dimensions = array<i32: 1>} : vector<1x128xi32>
    %2 = vector.extract_strided_slice %0 {offsets = [0, 1], sizes = [16, 127], strides = [1, 1]} : vector<16x128xf32> to vector<16x127xf32>
    %3 = vector.extract_strided_slice %0 {offsets = [0, 0], sizes = [16, 1], strides = [1, 1]} : vector<16x128xf32> to vector<16x1xf32>
    %4 = tpu.concatenate %2, %3 in 1 : vector<16x127xf32>, vector<16x1xf32> -> vector<16x128xf32>
    %5 = vector.extract_strided_slice %0 {offsets = [0, 127], sizes = [16, 1], strides = [1, 1]} : vector<16x128xf32> to vector<16x1xf32>
    %6 = vector.extract_strided_slice %0 {offsets = [0, 0], sizes = [16, 127], strides = [1, 1]} : vector<16x128xf32> to vector<16x127xf32>
    %7 = tpu.concatenate %5, %6 in 1 : vector<16x1xf32>, vector<16x127xf32> -> vector<16x128xf32>
    %c1_i32 = arith.constant 1 : i32
    %8 = vector.broadcast %c1_i32 : i32 to vector<1x128xi32>
    %9 = arith.andi %1, %8 : vector<1x128xi32>
    %c0_i32 = arith.constant 0 : i32
    %10 = vector.broadcast %c0_i32 : i32 to vector<1x128xi32>
    %11 = arith.cmpi eq, %9, %10 : vector<1x128xi32>
    %12 = vector.shape_cast %11 : vector<1x128xi1> to vector<1x128xi1>
    %13 = vector.broadcast %12 : vector<1x128xi1> to vector<16x128xi1>
    %14 = arith.select %13, %4, %7 : vector<16x128xi1>, vector<16x128xf32>
    %15 = arith.maximumf %0, %14 : vector<16x128xf32>
    %16 = vector.extract_strided_slice %15 {offsets = [0, 2], sizes = [16, 126], strides = [1, 1]} : vector<16x128xf32> to vector<16x126xf32>
    %17 = vector.extract_strided_slice %15 {offsets = [0, 0], sizes = [16, 2], strides = [1, 1]} : vector<16x128xf32> to vector<16x2xf32>
    %18 = tpu.concatenate %16, %17 in 1 : vector<16x126xf32>, vector<16x2xf32> -> vector<16x128xf32>
    %19 = vector.extract_strided_slice %15 {offsets = [0, 126], sizes = [16, 2], strides = [1, 1]} : vector<16x128xf32> to vector<16x2xf32>
    %20 = vector.extract_strided_slice %15 {offsets = [0, 0], sizes = [16, 126], strides = [1, 1]} : vector<16x128xf32> to vector<16x126xf32>
    %21 = tpu.concatenate %19, %20 in 1 : vector<16x2xf32>, vector<16x126xf32> -> vector<16x128xf32>
    %c2_i32 = arith.constant 2 : i32
    %22 = vector.broadcast %c2_i32 : i32 to vector<1x128xi32>
    %23 = arith.andi %1, %22 : vector<1x128xi32>
    %c0_i32_1 = arith.constant 0 : i32
    %24 = vector.broadcast %c0_i32_1 : i32 to vector<1x128xi32>
    %25 = arith.cmpi eq, %23, %24 : vector<1x128xi32>
    %26 = vector.shape_cast %25 : vector<1x128xi1> to vector<1x128xi1>
    %27 = vector.broadcast %26 : vector<1x128xi1> to vector<16x128xi1>
    %28 = arith.select %27, %18, %21 : vector<16x128xi1>, vector<16x128xf32>
    %29 = arith.maximumf %15, %28 : vector<16x128xf32>
    %30 = vector.extract_strided_slice %29 {offsets = [0, 4], sizes = [16, 124], strides = [1, 1]} : vector<16x128xf32> to vector<16x124xf32>
    %31 = vector.extract_strided_slice %29 {offsets = [0, 0], sizes = [16, 4], strides = [1, 1]} : vector<16x128xf32> to vector<16x4xf32>
    %32 = tpu.concatenate %30, %31 in 1 : vector<16x124xf32>, vector<16x4xf32> -> vector<16x128xf32>
    %33 = vector.extract_strided_slice %29 {offsets = [0, 124], sizes = [16, 4], strides = [1, 1]} : vector<16x128xf32> to vector<16x4xf32>
    %34 = vector.extract_strided_slice %29 {offsets = [0, 0], sizes = [16, 124], strides = [1, 1]} : vector<16x128xf32> to vector<16x124xf32>
    %35 = tpu.concatenate %33, %34 in 1 : vector<16x4xf32>, vector<16x124xf32> -> vector<16x128xf32>
    %c4_i32 = arith.constant 4 : i32
    %36 = vector.broadcast %c4_i32 : i32 to vector<1x128xi32>
    %37 = arith.andi %1, %36 : vector<1x128xi32>
    %c0_i32_2 = arith.constant 0 : i32
    %38 = vector.broadcast %c0_i32_2 : i32 to vector<1x128xi32>
    %39 = arith.cmpi eq, %37, %38 : vector<1x128xi32>
    %40 = vector.shape_cast %39 : vector<1x128xi1> to vector<1x128xi1>
    %41 = vector.broadcast %40 : vector<1x128xi1> to vector<16x128xi1>
    %42 = arith.select %41, %32, %35 : vector<16x128xi1>, vector<16x128xf32>
    %43 = arith.maximumf %29, %42 : vector<16x128xf32>
    %44 = vector.extract_strided_slice %43 {offsets = [0, 8], sizes = [16, 120], strides = [1, 1]} : vector<16x128xf32> to vector<16x120xf32>
    %45 = vector.extract_strided_slice %43 {offsets = [0, 0], sizes = [16, 8], strides = [1, 1]} : vector<16x128xf32> to vector<16x8xf32>
    %46 = tpu.concatenate %44, %45 in 1 : vector<16x120xf32>, vector<16x8xf32> -> vector<16x128xf32>
    %47 = vector.extract_strided_slice %43 {offsets = [0, 120], sizes = [16, 8], strides = [1, 1]} : vector<16x128xf32> to vector<16x8xf32>
    %48 = vector.extract_strided_slice %43 {offsets = [0, 0], sizes = [16, 120], strides = [1, 1]} : vector<16x128xf32> to vector<16x120xf32>
    %49 = tpu.concatenate %47, %48 in 1 : vector<16x8xf32>, vector<16x120xf32> -> vector<16x128xf32>
    %c8_i32 = arith.constant 8 : i32
    %50 = vector.broadcast %c8_i32 : i32 to vector<1x128xi32>
    %51 = arith.andi %1, %50 : vector<1x128xi32>
    %c0_i32_3 = arith.constant 0 : i32
    %52 = vector.broadcast %c0_i32_3 : i32 to vector<1x128xi32>
    %53 = arith.cmpi eq, %51, %52 : vector<1x128xi32>
    %54 = vector.shape_cast %53 : vector<1x128xi1> to vector<1x128xi1>
    %55 = vector.broadcast %54 : vector<1x128xi1> to vector<16x128xi1>
    %56 = arith.select %55, %46, %49 : vector<16x128xi1>, vector<16x128xf32>
    %57 = arith.maximumf %43, %56 : vector<16x128xf32>
    %58 = arith.subf %0, %57 : vector<16x128xf32>
    %cst = arith.constant -2.000000e+01 : f32
    %59 = vector.broadcast %cst : f32 to vector<16x128xf32>
    %60 = arith.subf %58, %59 : vector<16x128xf32>
    %cst_4 = arith.constant 5.000000e+02 : f32
    %61 = vector.broadcast %cst_4 : f32 to vector<16x128xf32>
    %62 = arith.mulf %60, %61 : vector<16x128xf32>
    %cst_5 = arith.constant 0.000000e+00 : f32
    %63 = vector.broadcast %cst_5 : f32 to vector<16x128xf32>
    %64 = arith.maximumf %62, %63 : vector<16x128xf32>
    %65 = math.floor %64 : vector<16x128xf32>
    %66 = arith.subf %64, %65 : vector<16x128xf32>
    %cst_6 = arith.constant 2.000000e-03 : f32
    %67 = vector.broadcast %cst_6 : f32 to vector<16x128xf32>
    %68 = arith.mulf %65, %67 : vector<16x128xf32>
    %cst_7 = arith.constant -2.000000e+01 : f32
    %69 = vector.broadcast %cst_7 : f32 to vector<16x128xf32>
    %70 = arith.addf %69, %68 : vector<16x128xf32>
    %71 = math.exp %70 : vector<16x128xf32>
    %cst_8 = arith.constant 0.00200200127 : f32
    %72 = vector.broadcast %cst_8 : f32 to vector<16x128xf32>
    %73 = arith.mulf %66, %72 : vector<16x128xf32>
    %cst_9 = arith.constant 1.000000e+00 : f32
    %74 = vector.broadcast %cst_9 : f32 to vector<16x128xf32>
    %75 = arith.addf %74, %73 : vector<16x128xf32>
    %76 = arith.mulf %71, %75 : vector<16x128xf32>
    %77 = tpu.iota {dimensions = array<i32: 1>} : vector<1x128xi32>
    %78 = vector.extract_strided_slice %76 {offsets = [0, 1], sizes = [16, 127], strides = [1, 1]} : vector<16x128xf32> to vector<16x127xf32>
    %79 = vector.extract_strided_slice %76 {offsets = [0, 0], sizes = [16, 1], strides = [1, 1]} : vector<16x128xf32> to vector<16x1xf32>
    %80 = tpu.concatenate %78, %79 in 1 : vector<16x127xf32>, vector<16x1xf32> -> vector<16x128xf32>
    %81 = vector.extract_strided_slice %76 {offsets = [0, 127], sizes = [16, 1], strides = [1, 1]} : vector<16x128xf32> to vector<16x1xf32>
    %82 = vector.extract_strided_slice %76 {offsets = [0, 0], sizes = [16, 127], strides = [1, 1]} : vector<16x128xf32> to vector<16x127xf32>
    %83 = tpu.concatenate %81, %82 in 1 : vector<16x1xf32>, vector<16x127xf32> -> vector<16x128xf32>
    %c1_i32_10 = arith.constant 1 : i32
    %84 = vector.broadcast %c1_i32_10 : i32 to vector<1x128xi32>
    %85 = arith.andi %77, %84 : vector<1x128xi32>
    %c0_i32_11 = arith.constant 0 : i32
    %86 = vector.broadcast %c0_i32_11 : i32 to vector<1x128xi32>
    %87 = arith.cmpi eq, %85, %86 : vector<1x128xi32>
    %88 = vector.shape_cast %87 : vector<1x128xi1> to vector<1x128xi1>
    %89 = vector.broadcast %88 : vector<1x128xi1> to vector<16x128xi1>
    %90 = arith.select %89, %80, %83 : vector<16x128xi1>, vector<16x128xf32>
    %91 = arith.addf %76, %90 : vector<16x128xf32>
    %92 = vector.extract_strided_slice %91 {offsets = [0, 2], sizes = [16, 126], strides = [1, 1]} : vector<16x128xf32> to vector<16x126xf32>
    %93 = vector.extract_strided_slice %91 {offsets = [0, 0], sizes = [16, 2], strides = [1, 1]} : vector<16x128xf32> to vector<16x2xf32>
    %94 = tpu.concatenate %92, %93 in 1 : vector<16x126xf32>, vector<16x2xf32> -> vector<16x128xf32>
    %95 = vector.extract_strided_slice %91 {offsets = [0, 126], sizes = [16, 2], strides = [1, 1]} : vector<16x128xf32> to vector<16x2xf32>
    %96 = vector.extract_strided_slice %91 {offsets = [0, 0], sizes = [16, 126], strides = [1, 1]} : vector<16x128xf32> to vector<16x126xf32>
    %97 = tpu.concatenate %95, %96 in 1 : vector<16x2xf32>, vector<16x126xf32> -> vector<16x128xf32>
    %c2_i32_12 = arith.constant 2 : i32
    %98 = vector.broadcast %c2_i32_12 : i32 to vector<1x128xi32>
    %99 = arith.andi %77, %98 : vector<1x128xi32>
    %c0_i32_13 = arith.constant 0 : i32
    %100 = vector.broadcast %c0_i32_13 : i32 to vector<1x128xi32>
    %101 = arith.cmpi eq, %99, %100 : vector<1x128xi32>
    %102 = vector.shape_cast %101 : vector<1x128xi1> to vector<1x128xi1>
    %103 = vector.broadcast %102 : vector<1x128xi1> to vector<16x128xi1>
    %104 = arith.select %103, %94, %97 : vector<16x128xi1>, vector<16x128xf32>
    %105 = arith.addf %91, %104 : vector<16x128xf32>
    %106 = vector.extract_strided_slice %105 {offsets = [0, 4], sizes = [16, 124], strides = [1, 1]} : vector<16x128xf32> to vector<16x124xf32>
    %107 = vector.extract_strided_slice %105 {offsets = [0, 0], sizes = [16, 4], strides = [1, 1]} : vector<16x128xf32> to vector<16x4xf32>
    %108 = tpu.concatenate %106, %107 in 1 : vector<16x124xf32>, vector<16x4xf32> -> vector<16x128xf32>
    %109 = vector.extract_strided_slice %105 {offsets = [0, 124], sizes = [16, 4], strides = [1, 1]} : vector<16x128xf32> to vector<16x4xf32>
    %110 = vector.extract_strided_slice %105 {offsets = [0, 0], sizes = [16, 124], strides = [1, 1]} : vector<16x128xf32> to vector<16x124xf32>
    %111 = tpu.concatenate %109, %110 in 1 : vector<16x4xf32>, vector<16x124xf32> -> vector<16x128xf32>
    %c4_i32_14 = arith.constant 4 : i32
    %112 = vector.broadcast %c4_i32_14 : i32 to vector<1x128xi32>
    %113 = arith.andi %77, %112 : vector<1x128xi32>
    %c0_i32_15 = arith.constant 0 : i32
    %114 = vector.broadcast %c0_i32_15 : i32 to vector<1x128xi32>
    %115 = arith.cmpi eq, %113, %114 : vector<1x128xi32>
    %116 = vector.shape_cast %115 : vector<1x128xi1> to vector<1x128xi1>
    %117 = vector.broadcast %116 : vector<1x128xi1> to vector<16x128xi1>
    %118 = arith.select %117, %108, %111 : vector<16x128xi1>, vector<16x128xf32>
    %119 = arith.addf %105, %118 : vector<16x128xf32>
    %120 = vector.extract_strided_slice %119 {offsets = [0, 8], sizes = [16, 120], strides = [1, 1]} : vector<16x128xf32> to vector<16x120xf32>
    %121 = vector.extract_strided_slice %119 {offsets = [0, 0], sizes = [16, 8], strides = [1, 1]} : vector<16x128xf32> to vector<16x8xf32>
    %122 = tpu.concatenate %120, %121 in 1 : vector<16x120xf32>, vector<16x8xf32> -> vector<16x128xf32>
    %123 = vector.extract_strided_slice %119 {offsets = [0, 120], sizes = [16, 8], strides = [1, 1]} : vector<16x128xf32> to vector<16x8xf32>
    %124 = vector.extract_strided_slice %119 {offsets = [0, 0], sizes = [16, 120], strides = [1, 1]} : vector<16x128xf32> to vector<16x120xf32>
    %125 = tpu.concatenate %123, %124 in 1 : vector<16x8xf32>, vector<16x120xf32> -> vector<16x128xf32>
    %c8_i32_16 = arith.constant 8 : i32
    %126 = vector.broadcast %c8_i32_16 : i32 to vector<1x128xi32>
    %127 = arith.andi %77, %126 : vector<1x128xi32>
    %c0_i32_17 = arith.constant 0 : i32
    %128 = vector.broadcast %c0_i32_17 : i32 to vector<1x128xi32>
    %129 = arith.cmpi eq, %127, %128 : vector<1x128xi32>
    %130 = vector.shape_cast %129 : vector<1x128xi1> to vector<1x128xi1>
    %131 = vector.broadcast %130 : vector<1x128xi1> to vector<16x128xi1>
    %132 = arith.select %131, %122, %125 : vector<16x128xi1>, vector<16x128xf32>
    %133 = arith.addf %119, %132 : vector<16x128xf32>
    %cst_18 = arith.constant 1.000000e+00 : f32
    %134 = vector.broadcast %cst_18 : f32 to vector<16x128xf32>
    %135 = arith.divf %134, %133 : vector<16x128xf32>
    %136 = arith.mulf %76, %135 : vector<16x128xf32>
    %c0_19 = arith.constant 0 : index
    %c0_20 = arith.constant 0 : index
    %137 = vector.load %arg2[%c0_19, %c0_20] : memref<16x128xf32, #tpu.memory_space<vmem>>, vector<16x128xf32>
    tpu.vector_store %arg2[%c0_19, %c0_20], %136 {strides = array<i32>} : memref<16x128xf32, #tpu.memory_space<vmem>>, vector<16x128xf32>,
    return
  }
  func.func @transform_0(%arg0: i32) -> (i32, i32) {
    %c0_i32 = arith.constant 0 : i32
    %c0_i32_0 = arith.constant 0 : i32
    return %arg0, %c0_i32 : i32, i32
  }
  func.func @transform_1(%arg0: i32) -> (i32, i32) {
    %c0_i32 = arith.constant 0 : i32
    %c0_i32_0 = arith.constant 0 : i32
    return %arg0, %c0_i32 : i32, i32
  }
}

</mosaic_0001>

<llo_original>
// kernel: tpu_custom_call.1
$region0: #{tpu_custom_call.1}
  #allocation0 [shape = 'u32[]', space=smem, size = 0x4, offset = 0x4, fixed_abs, tag = 'smem constant byte address 0x4 - core index']
  #allocation1 [shape = 'u32[144,128]{1,0:T(1,128)}', space=vmem, size = 0x12000, scoped, tag = 'internal scratch']
  %s0 = inlined_call_operand.hbm [shape: f32[16,128], index: 0, kind: input, shape index: {}]
  %s1 = inlined_call_operand.hbm [shape: f32[16,128], index: 1, kind: output, shape index: {}]
  %s2 = sld [smem:[#allocation0]]
  $region18: #{tpu_custom_call.1} parent=0
    _
  %s4 = ssub.s32 1, %s2
  %s5 = scalar_select 0, %s4, %s2
  $region1: #{tpu_custom_call.1} parent=0
    #allocation2 [shape = 'u8[8192]{0}', space=vmem, size = 0x2000, scoped, tag = 'input window, operand 0, single buffered']
    #allocation3 [shape = 's32[1]{0}', space=sflag, size = 0x4, scoped, tag = 'scoped memory for tpu_custom_call.1']
    #allocation4 [shape = 's32[1]{0}', space=sflag, size = 0x4, scoped, tag = 'scoped memory for tpu_custom_call.1']
    #allocation5 [shape = 'u8[8192]{0}', space=vmem, size = 0x2000, scoped, tag = 'output window, operand 0, single buffered']
    %6 = vsyncpa [#allocation3], 0
    %7 = vsyncpa [#allocation4], 0
    // Predicated region
    $region2: #{tpu_custom_call.1} parent=1 // pred_check
      _
    $region3: #{tpu_custom_call.1} parent=1 // pred_check_branch
      %9 = sbr.rel (0) target = $region5
    $region4: #{tpu_custom_call.1} parent=1 // pred_region
      %s11 = ssub.s32 256, 256
      %12 = vsyncadd [#allocation3], %s11
      %s13 = sshll.u32 [#allocation2], 4
      %s14 = int_to_ptr.vmem [resolvable:$true] %s13
      %19 = dma.hbm_to_vmem [thread:$0]  %s0, 256, %s14, [#allocation3], 128, 128, 8
    $region5: #{tpu_custom_call.1} parent=1 // pred_fallthru
      _
    // Predicated region
    $region6: #{tpu_custom_call.1} parent=1 // pred_check
      _
    $region7: #{tpu_custom_call.1} parent=1 // pred_check_branch
      %21 = sbr.rel (0) target = $region9
    $region8: #{tpu_custom_call.1} parent=1 // pred_region
      %22 = dma.done [#allocation3], 256
    $region9: #{tpu_custom_call.1} parent=1 // pred_fallthru
      _
    %v23 = vld [vmem:[#allocation2] sm:$0xff]
    %v24 = vld [vmem:[#allocation2 + $0x8] sm:$0xff]
    %v25 = vlaneseq
    %v26 = vand.u32 %v25, 127
    %29 = vrot.lane.b32.xlu0 %v23, 127
    %v30 = vpop.permute.xlu0 %29
    %31 = vrot.lane.b32.xlu0 %v24, 127
    %v32 = vpop.permute.xlu0 %31
    %35 = vrot.lane.b32.xlu0 %v23, 1
    %v36 = vpop.permute.xlu0 %35
    %37 = vrot.lane.b32.xlu0 %v24, 1
    %v38 = vpop.permute.xlu0 %37
    %v41 = vand.u32 %v26, 1
    %vm42 = vcmp.eq.s32.totalorder %v41, 0
    %v43 = vsel %vm42, 1, 0
    %vm44 = vcmp.eq.s32.totalorder %v43, 1
    %v45 = vsel %vm44, %v30, %v36
    %v46 = vsel %vm44, %v32, %v38
    %v47 = vmax.f32 %v23, %v45
    %v48 = vmax.f32 %v24, %v46
    %51 = vrot.lane.b32.xlu0 %v47, 126
    %v52 = vpop.permute.xlu0 %51
    %53 = vrot.lane.b32.xlu0 %v48, 126
    %v54 = vpop.permute.xlu0 %53
    %57 = vrot.lane.b32.xlu0 %v47, 2
    %v58 = vpop.permute.xlu0 %57
    %59 = vrot.lane.b32.xlu0 %v48, 2
    %v60 = vpop.permute.xlu0 %59
    %v63 = vand.u32 %v26, 2
    %vm64 = vcmp.eq.s32.totalorder %v63, 0
    %v65 = vsel %vm64, 1, 0
    %vm66 = vcmp.eq.s32.totalorder %v65, 1
    %v67 = vsel %vm66, %v52, %v58
    %v68 = vsel %vm66, %v54, %v60
    %v69 = vmax.f32 %v47, %v67
    %v70 = vmax.f32 %v48, %v68
    %73 = vrot.lane.b32.xlu0 %v69, 124
    %v74 = vpop.permute.xlu0 %73
    %75 = vrot.lane.b32.xlu0 %v70, 124
    %v76 = vpop.permute.xlu0 %75
    %79 = vrot.lane.b32.xlu0 %v69, 4
    %v80 = vpop.permute.xlu0 %79
    %81 = vrot.lane.b32.xlu0 %v70, 4
    %v82 = vpop.permute.xlu0 %81
    %v85 = vand.u32 %v26, 4
    %vm86 = vcmp.eq.s32.totalorder %v85, 0
    %v87 = vsel %vm86, 1, 0
    %vm88 = vcmp.eq.s32.totalorder %v87, 1
    %v89 = vsel %vm88, %v74, %v80
    %v90 = vsel %vm88, %v76, %v82
    %v91 = vmax.f32 %v69, %v89
    %v92 = vmax.f32 %v70, %v90
    %95 = vrot.lane.b32.xlu0 %v91, 120
    %v96 = vpop.permute.xlu0 %95
    %97 = vrot.lane.b32.xlu0 %v92, 120
    %v98 = vpop.permute.xlu0 %97
    %101 = vrot.lane.b32.xlu0 %v91, 8
    %v102 = vpop.permute.xlu0 %101
    %103 = vrot.lane.b32.xlu0 %v92, 8
    %v104 = vpop.permute.xlu0 %103
    %v107 = vand.u32 %v26, 8
    %vm108 = vcmp.eq.s32.totalorder %v107, 0
    %v109 = vsel %vm108, 1, 0
    %vm110 = vcmp.eq.s32.totalorder %v109, 1
    %v111 = vsel %vm110, %v96, %v102
    %v112 = vsel %vm110, %v98, %v104
    %v113 = vmax.f32 %v91, %v111
    %v114 = vmax.f32 %v92, %v112
    %v115 = vsub.f32 %v23, %v113
    %v116 = vsub.f32 %v24, %v114
    %v117 = vsub.f32 %v115, -20.0
    %v118 = vsub.f32 %v116, -20.0
    %v119 = vmul.f32 %v117, 500.0
    %v120 = vmul.f32 %v118, 500.0
    %v121 = vmax.f32 %v119, 0.0
    %v122 = vmax.f32 %v120, 0.0
    %v123 = vfloor.f32 %v121
    %v124 = vfloor.f32 %v122
    %v125 = vsub.f32 %v121, %v123
    %v126 = vsub.f32 %v122, %v124
    %v127 = vmul.f32 %v123, 0.002
    %v128 = vmul.f32 %v124, 0.002
    %v129 = vadd.f32 %v127, -20.0
    %v130 = vadd.f32 %v128, -20.0
    %v131 = vmul.f32 %v129, 1.442695
    %v132 = vpow.pop %v131
    %v133 = vmul.f32 %v130, 1.442695
    %v134 = vpow.pop %v133
    %v135 = vmul.f32 %v125, 0.0020020013
    %v136 = vmul.f32 %v126, 0.0020020013
    %v137 = vadd.f32 %v135, 1.0
    %v138 = vadd.f32 %v136, 1.0
    %v139 = vmul.f32 %v132, %v137
    %v140 = vmul.f32 %v134, %v138
    %143 = vrot.lane.b32.xlu0 %v139, 127
    %v144 = vpop.permute.xlu0 %143
    %145 = vrot.lane.b32.xlu0 %v140, 127
    %v146 = vpop.permute.xlu0 %145
    %149 = vrot.lane.b32.xlu0 %v139, 1
    %v150 = vpop.permute.xlu0 %149
    %151 = vrot.lane.b32.xlu0 %v140, 1
    %v152 = vpop.permute.xlu0 %151
    %v155 = vsel %vm44, %v144, %v150
    %v156 = vsel %vm44, %v146, %v152
    %v157 = vadd.f32 %v139, %v155
    %v158 = vadd.f32 %v140, %v156
    %161 = vrot.lane.b32.xlu0 %v157, 126
    %v162 = vpop.permute.xlu0 %161
    %163 = vrot.lane.b32.xlu0 %v158, 126
    %v164 = vpop.permute.xlu0 %163
    %167 = vrot.lane.b32.xlu0 %v157, 2
    %v168 = vpop.permute.xlu0 %167
    %169 = vrot.lane.b32.xlu0 %v158, 2
    %v170 = vpop.permute.xlu0 %169
    %v173 = vsel %vm66, %v162, %v168
    %v174 = vsel %vm66, %v164, %v170
    %v175 = vadd.f32 %v157, %v173
    %v176 = vadd.f32 %v158, %v174
    %179 = vrot.lane.b32.xlu0 %v175, 124
    %v180 = vpop.permute.xlu0 %179
    %181 = vrot.lane.b32.xlu0 %v176, 124
    %v182 = vpop.permute.xlu0 %181
    %185 = vrot.lane.b32.xlu0 %v175, 4
    %v186 = vpop.permute.xlu0 %185
    %187 = vrot.lane.b32.xlu0 %v176, 4
    %v188 = vpop.permute.xlu0 %187
    %v191 = vsel %vm88, %v180, %v186
    %v192 = vsel %vm88, %v182, %v188
    %v193 = vadd.f32 %v175, %v191
    %v194 = vadd.f32 %v176, %v192
    %197 = vrot.lane.b32.xlu0 %v193, 120
    %v198 = vpop.permute.xlu0 %197
    %199 = vrot.lane.b32.xlu0 %v194, 120
    %v200 = vpop.permute.xlu0 %199
    %203 = vrot.lane.b32.xlu0 %v193, 8
    %v204 = vpop.permute.xlu0 %203
    %205 = vrot.lane.b32.xlu0 %v194, 8
    %v206 = vpop.permute.xlu0 %205
    %v209 = vsel %vm110, %v198, %v204
    %v210 = vsel %vm110, %v200, %v206
    %v211 = vadd.f32 %v193, %v209
    %v212 = vadd.f32 %v194, %v210
    %v213 = vrcp.pop %v211
    %v214 = vmul.f32 1.0, %v213
    %v215 = vrcp.pop %v212
    %v216 = vmul.f32 1.0, %v215
    %v217 = vmul.f32 %v139, %v214
    %v218 = vmul.f32 %v140, %v216
    %219 = vst [vmem:[#allocation5] sm:$0xff] %v217
    %220 = vst [vmem:[#allocation5 + $0x8] sm:$0xff] %v218
    // Predicated region
    $region10: #{tpu_custom_call.1} parent=1 // pred_check
      _
    $region11: #{tpu_custom_call.1} parent=1 // pred_check_branch
      %222 = sbr.rel (0) target = $region13
    $region12: #{tpu_custom_call.1} parent=1 // pred_region
      %s224 = ssub.s32 256, 256
      %225 = vsyncadd [#allocation4], %s224
      %s226 = sshll.u32 [#allocation5], 4
      %s227 = int_to_ptr.vmem [resolvable:$true] %s226
      %232 = dma.vmem_to_hbm [thread:$0]  %s227, 256, %s1, [#allocation4], 128, 128, 8
    $region13: #{tpu_custom_call.1} parent=1 // pred_fallthru
      _
    // Predicated region
    $region14: #{tpu_custom_call.1} parent=1 // pred_check
      _
    $region15: #{tpu_custom_call.1} parent=1 // pred_check_branch
      %234 = sbr.rel (0) target = $region17
    $region16: #{tpu_custom_call.1} parent=1 // pred_region
      %235 = dma.done [#allocation4], 256
    $region17: #{tpu_custom_call.1} parent=1 // pred_fallthru
      _
    %236 = vsyncpa [#allocation3], 1
    %237 = vsyncpa [#allocation4], 1

</llo_original>
